<compile_context>
chip_gen: v5e
topology: v5e:2x2
jax: 0.10.0
libtpu: 0.0.40
codegen_flags: <defaults>
</compile_context>

<pallas_src>
import numpy as np
import jax
import jax.numpy as jnp
from jax import lax
from jax.experimental import pallas as pl
from jax.experimental.pallas import tpu as pltpu

D_IN = 16                 # sinusoidal embedding width (8 freqs x sin/cos)
HID = 32                  # per-net hidden width
FUSED = 2 * HID           # fused hidden width: trans -> lanes 0:32, rots -> 32:64
SUB = 8                   # cameras per Rodrigues/compose sub-slice (epilogue)
MAX_CAMS_PER_BLOCK = 256  # fills v6e/v7x 256-row MXU; two 128-row tiles on v5e
OUT_LANES = 24            # lanes 0:16 flat c2w, 16:19 t, 19:22 r, 22:24 zero


def _round_up(x, m):
    return -(-x // m) * m


# --------------------------------------------------------------------------
# Pallas kernel: embedding + fused MLP + make_c2w + compose with init_c2w
# --------------------------------------------------------------------------
def _build_pose_call(num_cams_padded, num_cams, cams_per_block):
    B = cams_per_block
    grid = num_cams_padded // B
    n_sub = B // SUB

    def pose_kernel(canvas_ref, w_ref, b_ref, init_ref, out_ref, head_scr):
        i = pl.program_id(0)

        # ---- in-kernel sinusoidal embedding: one camera per sublane row ----
        coef = canvas_ref[0:1, :]          # (1,64): pi*2^l on lanes 0:16, else 0
        phase = canvas_ref[1:2, :]         # (1,64): pi/2 on cos lanes 8:16, else 0
        row = lax.broadcasted_iota(jnp.int32, (B, 1), 0)
        cam = (i * B + row).astype(jnp.float32)
        u = cam / jnp.float32(num_cams)
        # sin(theta + pi/2) == cos(theta); lanes >= D_IN are sin(0) == 0.
        x = jnp.sin(coef * u + phase)                              # (B, 64)

        # ---- fused TransNet + RotsNet MLP: 3 MXU matmuls per block ----
        h = jnp.maximum(
            jnp.dot(x, w_ref[0], preferred_element_type=jnp.float32) + b_ref[0], 0.0)
        h = jnp.maximum(
            jnp.dot(h, w_ref[1], preferred_element_type=jnp.float32) + b_ref[1], 0.0)
        y = jnp.dot(h, w_ref[2], preferred_element_type=jnp.float32) + b_ref[2]
        head_scr[...] = y[:, 0:SUB]        # lanes 0:3 = t, 3:6 = r, 6:8 = 0

        # ---- Rodrigues + compose, SUB cameras at a time (bounded vregs) ----
        def epi_body(c, carry):
            base = pl.multiple_of(c * SUB, SUB)
            hd = head_scr[pl.ds(base, SUB), :]                     # (8, 8)
            g = init_ref[pl.ds(base, SUB), :]                      # (8, 16)
            tx, ty, tz = hd[:, 0:1], hd[:, 1:2], hd[:, 2:3]
            rx, ry, rz = hd[:, 3:4], hd[:, 4:5], hd[:, 5:6]

            n2 = rx * rx + ry * ry + rz * rz
            n = jnp.sqrt(n2) + 1e-15
            a = jnp.sin(n) / n
            b = (1.0 - jnp.cos(n)) / (n * n)
            # R = I + a*skew(r) + b*skew(r)^2,  skew^2 = r r^T - (r.r) I
            R00 = 1.0 + b * (rx * rx - n2)
            R01 = a * (-rz) + b * (rx * ry)
            R02 = a * ry + b * (rx * rz)
            R10 = a * rz + b * (rx * ry)
            R11 = 1.0 + b * (ry * ry - n2)
            R12 = a * (-rx) + b * (ry * rz)
            R20 = a * (-ry) + b * (rx * rz)
            R21 = a * rx + b * (ry * rz)
            R22 = 1.0 + b * (rz * rz - n2)

            # compose: out_row_i = sum_k c2w[i,k] * init_row_k  (row-slab FMAs)
            g0, g1, g2, g3 = g[:, 0:4], g[:, 4:8], g[:, 8:12], g[:, 12:16]
            row0 = R00 * g0 + R01 * g1 + R02 * g2 + tx * g3
            row1 = R10 * g0 + R11 * g1 + R12 * g2 + ty * g3
            row2 = R20 * g0 + R21 * g1 + R22 * g2 + tz * g3
            row3 = g3                                              # [0 0 0 1] row
            packed = jnp.concatenate([row0, row1, row2, row3, hd], axis=1)  # (8,24)
            out_ref[pl.ds(base, SUB), :] = packed
            return carry

        lax.fori_loop(0, n_sub, epi_body, 0)

    call = pl.pallas_call(
        pose_kernel,
        out_shape=jax.ShapeDtypeStruct((num_cams_padded, OUT_LANES), jnp.float32),
        grid_spec=pltpu.PrefetchScalarGridSpec(
            num_scalar_prefetch=0,
            grid=(grid,),
            in_specs=[
                pl.BlockSpec((2, FUSED), lambda i: (0, 0)),            # coef/phase canvas
                pl.BlockSpec((3, FUSED, FUSED), lambda i: (0, 0, 0)),  # weight slab
                pl.BlockSpec((3, 1, FUSED), lambda i: (0, 0, 0)),      # bias slab (bcast)
                pl.BlockSpec((B, 16), lambda i: (i, 0)),               # init c2w (flat)
            ],
            out_specs=pl.BlockSpec((B, OUT_LANES), lambda i: (i, 0)),
            scratch_shapes=[pltpu.VMEM((B, SUB), jnp.float32)],        # MLP head stash
        ),
        compiler_params=pltpu.CompilerParams(
            dimension_semantics=("parallel",)),
    )
    return jax.jit(call)


# --------------------------------------------------------------------------
# Host-side parameter construction / fusion
# --------------------------------------------------------------------------
def _init_linear(key, fan_in, fan_out, scale=0.1):
    kw, kb = jax.random.split(key)
    w = jax.random.normal(kw, (fan_in, fan_out), jnp.float32) * scale
    b = jax.random.normal(kb, (fan_out,), jnp.float32) * scale
    return w, b


def _fuse_params(trans_layers, rots_layers):
    (wt1, bt1), (wt2, bt2), (wt3, bt3) = trans_layers
    (wr1, br1), (wr2, br2), (wr3, br3) = rots_layers
    # NOTE: w1 rows >= D_IN must stay exactly zero (embedding lanes >= D_IN are 0).
    w1 = jnp.zeros((FUSED, FUSED), jnp.float32)
    w1 = w1.at[:D_IN, :HID].set(wt1).at[:D_IN, HID:FUSED].set(wr1)
    w2 = jnp.zeros((FUSED, FUSED), jnp.float32)
    w2 = w2.at[:HID, :HID].set(wt2).at[HID:FUSED, HID:FUSED].set(wr2)
    w3 = jnp.zeros((FUSED, FUSED), jnp.float32)
    w3 = w3.at[:HID, 0:3].set(wt3).at[HID:FUSED, 3:6].set(wr3)
    b1 = jnp.zeros((FUSED,), jnp.float32).at[:HID].set(bt1).at[HID:].set(br1)
    b2 = jnp.zeros((FUSED,), jnp.float32).at[:HID].set(bt2).at[HID:].set(br2)
    b3 = jnp.zeros((FUSED,), jnp.float32).at[0:3].set(bt3).at[3:6].set(br3)
    w_slab = jnp.stack([w1, w2, w3])                  # (3, 64, 64)
    b_slab = jnp.stack([b1, b2, b3])[:, None, :]      # (3, 1, 64) -- bcast in kernel
    return w_slab, b_slab


def _emb_phase_canvas():
    freqs = np.float32(np.pi) * (2.0 ** np.arange(D_IN // 2, dtype=np.float32))
    coef = np.zeros((FUSED,), np.float32)
    coef[:D_IN // 2] = freqs
    coef[D_IN // 2:D_IN] = freqs
    phase = np.zeros((FUSED,), np.float32)
    phase[D_IN // 2:D_IN] = np.float32(np.pi / 2.0)   # sin(x + pi/2) == cos(x)
    return jnp.asarray(np.stack([coef, phase]))       # (2, 64)


# --------------------------------------------------------------------------
# JAX/Pallas port of LearnPoseNet_couple
# --------------------------------------------------------------------------
class LearnPoseNetCouple:
    """JAX/Pallas port of LearnPoseNet_couple.forward (all cameras batched)."""

    def __init__(self, num_cams, learn_R=True, learn_t=True, init_c2w=None,
                 key=jax.random.PRNGKey(0)):
        self.num_cams = num_cams
        self.cams_per_block = min(MAX_CAMS_PER_BLOCK, _round_up(num_cams, SUB))
        self.num_cams_padded = _round_up(num_cams, self.cams_per_block)
        self.init_c2w = init_c2w                      # (N, 4, 4) or None

        keys = jax.random.split(key, 6)
        # TransNet / RotsNet_ synthesized as small MLPs (index -> 3 values).
        self.trans_layers = [_init_linear(keys[0], D_IN, HID),
                             _init_linear(keys[1], HID, HID),
                             _init_linear(keys[2], HID, 3)]
        self.rots_layers = [_init_linear(keys[3], D_IN, HID),
                            _init_linear(keys[4], HID, HID),
                            _init_linear(keys[5], HID, 3)]
        self._w_slab, self._b_slab = _fuse_params(self.trans_layers, self.rots_layers)
        self._canvas = _emb_phase_canvas()

        # Flattened init_c2w (identity for padding rows / when init_c2w is None).
        init_flat = np.tile(np.eye(4, dtype=np.float32).reshape(1, 16),
                            (self.num_cams_padded, 1))
        if init_c2w is not None:
            init_flat[:num_cams] = np.asarray(init_c2w, np.float32).reshape(num_cams, 16)
        self._init_flat = jnp.asarray(init_flat)

        self._call = _build_pose_call(self.num_cams_padded, num_cams,
                                      self.cams_per_block)
        # TODO(synk): cache is valid because no training is ported here; if the
        # memorize / init_posenet_train optimizer loops were implemented, the
        # cache must be invalidated whenever the MLP parameters change.
        self._cache = None

        # Host-side buffers mirrored from the PyTorch module (numpy).
        self.t = np.zeros((num_cams, 3), np.float32)
        self.r = np.zeros((num_cams, 3), np.float32)
        self.clean_memory()

    def clean_memory(self):
        self.t_m = np.zeros((self.num_cams, 3), np.float32)
        self.r_m = np.zeros((self.num_cams, 3), np.float32)
        self.record = np.zeros((self.num_cams, 1), np.float32)

    def _compute_all(self):
        out = self._call(self._canvas, self._w_slab, self._b_slab, self._init_flat)
        c2w_all = out[:self.num_cams, :16].reshape(self.num_cams, 4, 4)  # stays on device
        head = np.asarray(out[:self.num_cams, 16:22])                    # one host copy
        t_all = head[:, 0:3]
        r_all = head[:, 3:6]
        return c2w_all, r_all, t_all

    def forward_all(self):
        if self._cache is None:
            self._cache = self._compute_all()
        return self._cache[0]

    def forward(self, cam_id):
        cam_id = int(cam_id)
        if self._cache is None:
            self._cache = self._compute_all()
        c2w_all, r_all, t_all = self._cache
        r3, t3 = r_all[cam_id], t_all[cam_id]
        if self.record[cam_id, 0] == 0 and cam_id != 0:
            self.record[cam_id] += 1
            self.t_m[cam_id] = t3
            self.r_m[cam_id] = r3
        self.r[cam_id] = r3
        self.t[cam_id] = t3
        return c2w_all[cam_id]

    def get_t(self):
        return self.t


# --------------------------------------------------------------------------
# Pure-JAX reference of the same forward (for validation)
# --------------------------------------------------------------------------
def _embed_feat(cam_id, num_cams):
    u = jnp.float32(cam_id) / jnp.float32(num_cams)
    freqs = 2.0 ** jnp.arange(D_IN // 2, dtype=jnp.float32)
    ang = jnp.pi * freqs * u
    return jnp.concatenate([jnp.sin(ang), jnp.cos(ang)])


def ref_make_c2w(r, t):
    rx, ry, rz = r[0], r[1], r[2]
    skew = jnp.array([[0.0, -rz, ry], [rz, 0.0, -rx], [-ry, rx, 0.0]], jnp.float32)
    n = jnp.sqrt(jnp.sum(r * r)) + 1e-15
    R = (jnp.eye(3, dtype=jnp.float32)
         + (jnp.sin(n) / n) * skew
         + ((1.0 - jnp.cos(n)) / (n * n)) * (skew @ skew))
    top = jnp.concatenate([R, t[:, None]], axis=1)
    bottom = jnp.array([[0.0, 0.0, 0.0, 1.0]], jnp.float32)
    return jnp.concatenate([top, bottom], axis=0)


def _ref_mlp(feat, layers):
    h = feat
    for i, (w, b) in enumerate(layers):
        h = jnp.dot(h, w, precision=jax.lax.Precision.HIGHEST) + b
        if i < len(layers) - 1:
            h = jnp.maximum(h, 0.0)
    return h


def reference_forward(net, cam_id):
    feat = _embed_feat(cam_id, net.num_cams)
    r = _ref_mlp(feat, net.rots_layers)
    t = _ref_mlp(feat, net.trans_layers)
    c2w = ref_make_c2w(r, t)
    if net.init_c2w is not None:
        c2w = c2w @ net.init_c2w[cam_id]
    return c2w, r, t


if __name__ == "__main__":
    key = jax.random.PRNGKey(0)
    k_params, k_r, k_t = jax.random.split(key, 3)

    num_cams = 12   # pads to a single 16-camera block -> grid of 1 step
    r0 = jax.random.normal(k_r, (num_cams, 3), jnp.float32) * 0.05
    t0 = jax.random.normal(k_t, (num_cams, 3), jnp.float32) * 0.5
    init_c2w = jnp.stack([ref_make_c2w(r0[i], t0[i]) for i in range(num_cams)])

    net = LearnPoseNetCouple(num_cams, learn_R=True, learn_t=True,
                             init_c2w=init_c2w, key=k_params)

    c2w0 = net.forward(0)
    jax.block_until_ready(c2w0)

    for cam_id in range(num_cams):
        c2w = np.asarray(net.forward(cam_id))
        c2w_ref, _, _ = reference_forward(net, cam_id)
        np.testing.assert_allclose(c2w, np.asarray(c2w_ref), rtol=1e-2, atol=1e-2)
        assert c2w.shape == (4, 4)

    print("KERNEL_OK")
</pallas_src>

<mosaic_0001>
module attributes {stable_mosaic.version = 11 : i64} {
  func.func @pose_kernel(%arg0: i32, %arg1: memref<2x64xf32, #tpu.memory_space<vmem>>, %arg2: memref<3x64x64xf32, #tpu.memory_space<vmem>>, %arg3: memref<3x1x64xf32, #tpu.memory_space<vmem>>, %arg4: memref<16x16xf32, #tpu.memory_space<vmem>>, %arg5: memref<16x24xf32, #tpu.memory_space<vmem>>, %arg6: memref<16x8xf32, #tpu.memory_space<vmem>>) attributes {dimension_semantics = [#tpu.dimension_semantics<parallel>], iteration_bounds = array<i64: 1>, scalar_prefetch = 0 : i64, scratch_operands = 1 : i64, tpu.core_type = #tpu.core_type<tc>, window_params = [{pipeline_mode = #tpu.pipeline_mode<synchronous>, transform_indices = @transform_0, window_bounds = array<i64: 2, 64>}, {pipeline_mode = #tpu.pipeline_mode<synchronous>, transform_indices = @transform_1, window_bounds = array<i64: 3, 64, 64>}, {pipeline_mode = #tpu.pipeline_mode<synchronous>, transform_indices = @transform_2, window_bounds = array<i64: 3, 1, 64>}, {transform_indices = @transform_3, window_bounds = array<i64: 16, 16>}, {transform_indices = @transform_4, window_bounds = array<i64: 16, 24>}]} {
    %c0 = arith.constant 0 : index
    %c0_0 = arith.constant 0 : index
    %0 = vector.load %arg1[%c0, %c0_0] : memref<2x64xf32, #tpu.memory_space<vmem>>, vector<1x64xf32>
    %c1 = arith.constant 1 : index
    %c0_1 = arith.constant 0 : index
    %1 = vector.load %arg1[%c1, %c0_1] : memref<2x64xf32, #tpu.memory_space<vmem>>, vector<1x64xf32>
    %2 = tpu.iota {dimensions = array<i32: 0>} : vector<16x1xi32>
    %c16_i32 = arith.constant 16 : i32
    %3 = arith.muli %arg0, %c16_i32 : i32
    %4 = vector.broadcast %3 : i32 to vector<16x1xi32>
    %5 = arith.addi %4, %2 : vector<16x1xi32>
    %6 = arith.sitofp %5 : vector<16x1xi32> to vector<16x1xf32>
    %cst = arith.constant 1.200000e+01 : f32
    %7 = vector.broadcast %cst : f32 to vector<16x1xf32>
    %8 = arith.divf %6, %7 : vector<16x1xf32>
    %9 = vector.broadcast %0 : vector<1x64xf32> to vector<16x64xf32>
    %10 = vector.broadcast %8 : vector<16x1xf32> to vector<16x64xf32>
    %11 = arith.mulf %9, %10 : vector<16x64xf32>
    %12 = vector.broadcast %1 : vector<1x64xf32> to vector<16x64xf32>
    %13 = arith.addf %11, %12 : vector<16x64xf32>
    %14 = math.sin %13 : vector<16x64xf32>
    %c0_2 = arith.constant 0 : index
    %c0_3 = arith.constant 0 : index
    %c0_4 = arith.constant 0 : index
    %15 = vector.load %arg2[%c0_2, %c0_3, %c0_4] : memref<3x64x64xf32, #tpu.memory_space<vmem>>, vector<1x64x64xf32>
    %16 = vector.shape_cast %15 : vector<1x64x64xf32> to vector<64x64xf32>
    %cst_5 = arith.constant dense<0.000000e+00> : vector<16x64xf32>
    %17 = tpu.matmul %14, %16, %cst_5 {dimension_numbers = #tpu.dot_dimension_numbers<[1], [0], [0], [1], [0, 0, 1, 1], [], []>} : vector<16x64xf32>, vector<64x64xf32>, vector<16x64xf32> -> vector<16x64xf32>
    %c0_6 = arith.constant 0 : index
    %c0_7 = arith.constant 0 : index
    %c0_8 = arith.constant 0 : index
    %18 = vector.load %arg3[%c0_6, %c0_7, %c0_8] : memref<3x1x64xf32, #tpu.memory_space<vmem>>, vector<1x1x64xf32>
    %19 = vector.shape_cast %18 : vector<1x1x64xf32> to vector<1x64xf32>
    %20 = vector.broadcast %19 : vector<1x64xf32> to vector<16x64xf32>
    %21 = arith.addf %17, %20 : vector<16x64xf32>
    %cst_9 = arith.constant 0.000000e+00 : f32
    %22 = vector.broadcast %cst_9 : f32 to vector<16x64xf32>
    %23 = arith.maximumf %21, %22 : vector<16x64xf32>
    %c1_10 = arith.constant 1 : index
    %c0_11 = arith.constant 0 : index
    %c0_12 = arith.constant 0 : index
    %24 = vector.load %arg2[%c1_10, %c0_11, %c0_12] : memref<3x64x64xf32, #tpu.memory_space<vmem>>, vector<1x64x64xf32>
    %25 = vector.shape_cast %24 : vector<1x64x64xf32> to vector<64x64xf32>
    %cst_13 = arith.constant dense<0.000000e+00> : vector<16x64xf32>
    %26 = tpu.matmul %23, %25, %cst_13 {dimension_numbers = #tpu.dot_dimension_numbers<[1], [0], [0], [1], [0, 0, 1, 1], [], []>} : vector<16x64xf32>, vector<64x64xf32>, vector<16x64xf32> -> vector<16x64xf32>
    %c1_14 = arith.constant 1 : index
    %c0_15 = arith.constant 0 : index
    %c0_16 = arith.constant 0 : index
    %27 = vector.load %arg3[%c1_14, %c0_15, %c0_16] : memref<3x1x64xf32, #tpu.memory_space<vmem>>, vector<1x1x64xf32>
    %28 = vector.shape_cast %27 : vector<1x1x64xf32> to vector<1x64xf32>
    %29 = vector.broadcast %28 : vector<1x64xf32> to vector<16x64xf32>
    %30 = arith.addf %26, %29 : vector<16x64xf32>
    %cst_17 = arith.constant 0.000000e+00 : f32
    %31 = vector.broadcast %cst_17 : f32 to vector<16x64xf32>
    %32 = arith.maximumf %30, %31 : vector<16x64xf32>
    %c2 = arith.constant 2 : index
    %c0_18 = arith.constant 0 : index
    %c0_19 = arith.constant 0 : index
    %33 = vector.load %arg2[%c2, %c0_18, %c0_19] : memref<3x64x64xf32, #tpu.memory_space<vmem>>, vector<1x64x64xf32>
    %34 = vector.shape_cast %33 : vector<1x64x64xf32> to vector<64x64xf32>
    %cst_20 = arith.constant dense<0.000000e+00> : vector<16x64xf32>
    %35 = tpu.matmul %32, %34, %cst_20 {dimension_numbers = #tpu.dot_dimension_numbers<[1], [0], [0], [1], [0, 0, 1, 1], [], []>} : vector<16x64xf32>, vector<64x64xf32>, vector<16x64xf32> -> vector<16x64xf32>
    %c2_21 = arith.constant 2 : index
    %c0_22 = arith.constant 0 : index
    %c0_23 = arith.constant 0 : index
    %36 = vector.load %arg3[%c2_21, %c0_22, %c0_23] : memref<3x1x64xf32, #tpu.memory_space<vmem>>, vector<1x1x64xf32>
    %37 = vector.shape_cast %36 : vector<1x1x64xf32> to vector<1x64xf32>
    %38 = vector.broadcast %37 : vector<1x64xf32> to vector<16x64xf32>
    %39 = arith.addf %35, %38 : vector<16x64xf32>
    %40 = vector.extract_strided_slice %39 {offsets = [0, 0], sizes = [16, 8], strides = [1, 1]} : vector<16x64xf32> to vector<16x8xf32>
    %c0_24 = arith.constant 0 : index
    %c0_25 = arith.constant 0 : index
    %41 = vector.load %arg6[%c0_24, %c0_25] : memref<16x8xf32, #tpu.memory_space<vmem>>, vector<16x8xf32>
    tpu.vector_store %arg6[%c0_24, %c0_25], %40 {strides = array<i32>} : memref<16x8xf32, #tpu.memory_space<vmem>>, vector<16x8xf32>,
    %c0_i32 = arith.constant 0 : i32
    %c2_i32 = arith.constant 2 : i32
    %42 = arith.addi %c0_i32, %c2_i32 : i32
    %c1_i32 = arith.constant 1 : i32
    scf.for %arg7 = %c0_i32 to %42 step %c1_i32  : i32 {
      %c8_i32 = arith.constant 8 : i32
      %43 = arith.muli %arg7, %c8_i32 : i32
      %44 = tpu.assume_multiple %43, 8 : i32
      %45 = arith.index_cast %44 : i32 to index
      %c0_27 = arith.constant 0 : index
      %46 = vector.load %arg6[%45, %c0_27] : memref<16x8xf32, #tpu.memory_space<vmem>>, vector<8x8xf32>
      %47 = arith.index_cast %44 : i32 to index
      %c0_28 = arith.constant 0 : index
      %48 = vector.load %arg4[%47, %c0_28] : memref<16x16xf32, #tpu.memory_space<vmem>>, vector<8x16xf32>
      %49 = vector.extract_strided_slice %46 {offsets = [0, 0], sizes = [8, 1], strides = [1, 1]} : vector<8x8xf32> to vector<8x1xf32>
      %50 = vector.extract_strided_slice %46 {offsets = [0, 1], sizes = [8, 1], strides = [1, 1]} : vector<8x8xf32> to vector<8x1xf32>
      %51 = vector.extract_strided_slice %46 {offsets = [0, 2], sizes = [8, 1], strides = [1, 1]} : vector<8x8xf32> to vector<8x1xf32>
      %52 = vector.extract_strided_slice %46 {offsets = [0, 3], sizes = [8, 1], strides = [1, 1]} : vector<8x8xf32> to vector<8x1xf32>
      %53 = vector.extract_strided_slice %46 {offsets = [0, 4], sizes = [8, 1], strides = [1, 1]} : vector<8x8xf32> to vector<8x1xf32>
      %54 = vector.extract_strided_slice %46 {offsets = [0, 5], sizes = [8, 1], strides = [1, 1]} : vector<8x8xf32> to vector<8x1xf32>
      %55 = arith.mulf %52, %52 : vector<8x1xf32>
      %56 = arith.mulf %53, %53 : vector<8x1xf32>
      %57 = arith.addf %55, %56 : vector<8x1xf32>
      %58 = arith.mulf %54, %54 : vector<8x1xf32>
      %59 = arith.addf %57, %58 : vector<8x1xf32>
      %60 = math.sqrt %59 : vector<8x1xf32>
      %cst_29 = arith.constant 1.000000e-15 : f32
      %61 = vector.broadcast %cst_29 : f32 to vector<8x1xf32>
      %62 = arith.addf %60, %61 : vector<8x1xf32>
      %63 = math.sin %62 : vector<8x1xf32>
      %64 = arith.divf %63, %62 : vector<8x1xf32>
      %65 = math.cos %62 : vector<8x1xf32>
      %cst_30 = arith.constant 1.000000e+00 : f32
      %66 = vector.broadcast %cst_30 : f32 to vector<8x1xf32>
      %67 = arith.subf %66, %65 : vector<8x1xf32>
      %68 = arith.mulf %62, %62 : vector<8x1xf32>
      %69 = arith.divf %67, %68 : vector<8x1xf32>
      %70 = arith.mulf %52, %52 : vector<8x1xf32>
      %71 = arith.subf %70, %59 : vector<8x1xf32>
      %72 = arith.mulf %69, %71 : vector<8x1xf32>
      %cst_31 = arith.constant 1.000000e+00 : f32
      %73 = vector.broadcast %cst_31 : f32 to vector<8x1xf32>
      %74 = arith.addf %73, %72 : vector<8x1xf32>
      %cst_32 = arith.constant 0.000000e+00 : f32
      %75 = vector.broadcast %cst_32 : f32 to vector<8x1xf32>
      %76 = arith.subf %75, %54 : vector<8x1xf32>
      %77 = arith.mulf %64, %76 : vector<8x1xf32>
      %78 = arith.mulf %52, %53 : vector<8x1xf32>
      %79 = arith.mulf %69, %78 : vector<8x1xf32>
      %80 = arith.addf %77, %79 : vector<8x1xf32>
      %81 = arith.mulf %64, %53 : vector<8x1xf32>
      %82 = arith.mulf %52, %54 : vector<8x1xf32>
      %83 = arith.mulf %69, %82 : vector<8x1xf32>
      %84 = arith.addf %81, %83 : vector<8x1xf32>
      %85 = arith.mulf %64, %54 : vector<8x1xf32>
      %86 = arith.mulf %52, %53 : vector<8x1xf32>
      %87 = arith.mulf %69, %86 : vector<8x1xf32>
      %88 = arith.addf %85, %87 : vector<8x1xf32>
      %89 = arith.mulf %53, %53 : vector<8x1xf32>
      %90 = arith.subf %89, %59 : vector<8x1xf32>
      %91 = arith.mulf %69, %90 : vector<8x1xf32>
      %cst_33 = arith.constant 1.000000e+00 : f32
      %92 = vector.broadcast %cst_33 : f32 to vector<8x1xf32>
      %93 = arith.addf %92, %91 : vector<8x1xf32>
      %cst_34 = arith.constant 0.000000e+00 : f32
      %94 = vector.broadcast %cst_34 : f32 to vector<8x1xf32>
      %95 = arith.subf %94, %52 : vector<8x1xf32>
      %96 = arith.mulf %64, %95 : vector<8x1xf32>
      %97 = arith.mulf %53, %54 : vector<8x1xf32>
      %98 = arith.mulf %69, %97 : vector<8x1xf32>
      %99 = arith.addf %96, %98 : vector<8x1xf32>
      %cst_35 = arith.constant 0.000000e+00 : f32
      %100 = vector.broadcast %cst_35 : f32 to vector<8x1xf32>
      %101 = arith.subf %100, %53 : vector<8x1xf32>
      %102 = arith.mulf %64, %101 : vector<8x1xf32>
      %103 = arith.mulf %52, %54 : vector<8x1xf32>
      %104 = arith.mulf %69, %103 : vector<8x1xf32>
      %105 = arith.addf %102, %104 : vector<8x1xf32>
      %106 = arith.mulf %64, %52 : vector<8x1xf32>
      %107 = arith.mulf %53, %54 : vector<8x1xf32>
      %108 = arith.mulf %69, %107 : vector<8x1xf32>
      %109 = arith.addf %106, %108 : vector<8x1xf32>
      %110 = arith.mulf %54, %54 : vector<8x1xf32>
      %111 = arith.subf %110, %59 : vector<8x1xf32>
      %112 = arith.mulf %69, %111 : vector<8x1xf32>
      %cst_36 = arith.constant 1.000000e+00 : f32
      %113 = vector.broadcast %cst_36 : f32 to vector<8x1xf32>
      %114 = arith.addf %113, %112 : vector<8x1xf32>
      %115 = vector.extract_strided_slice %48 {offsets = [0, 0], sizes = [8, 4], strides = [1, 1]} : vector<8x16xf32> to vector<8x4xf32>
      %116 = vector.extract_strided_slice %48 {offsets = [0, 4], sizes = [8, 4], strides = [1, 1]} : vector<8x16xf32> to vector<8x4xf32>
      %117 = vector.extract_strided_slice %48 {offsets = [0, 8], sizes = [8, 4], strides = [1, 1]} : vector<8x16xf32> to vector<8x4xf32>
      %118 = vector.extract_strided_slice %48 {offsets = [0, 12], sizes = [8, 4], strides = [1, 1]} : vector<8x16xf32> to vector<8x4xf32>
      %119 = vector.broadcast %74 : vector<8x1xf32> to vector<8x4xf32>
      %120 = arith.mulf %119, %115 : vector<8x4xf32>
      %121 = vector.broadcast %80 : vector<8x1xf32> to vector<8x4xf32>
      %122 = arith.mulf %121, %116 : vector<8x4xf32>
      %123 = arith.addf %120, %122 : vector<8x4xf32>
      %124 = vector.broadcast %84 : vector<8x1xf32> to vector<8x4xf32>
      %125 = arith.mulf %124, %117 : vector<8x4xf32>
      %126 = arith.addf %123, %125 : vector<8x4xf32>
      %127 = vector.broadcast %49 : vector<8x1xf32> to vector<8x4xf32>
      %128 = arith.mulf %127, %118 : vector<8x4xf32>
      %129 = arith.addf %126, %128 : vector<8x4xf32>
      %130 = vector.broadcast %88 : vector<8x1xf32> to vector<8x4xf32>
      %131 = arith.mulf %130, %115 : vector<8x4xf32>
      %132 = vector.broadcast %93 : vector<8x1xf32> to vector<8x4xf32>
      %133 = arith.mulf %132, %116 : vector<8x4xf32>
      %134 = arith.addf %131, %133 : vector<8x4xf32>
      %135 = vector.broadcast %99 : vector<8x1xf32> to vector<8x4xf32>
      %136 = arith.mulf %135, %117 : vector<8x4xf32>
      %137 = arith.addf %134, %136 : vector<8x4xf32>
      %138 = vector.broadcast %50 : vector<8x1xf32> to vector<8x4xf32>
      %139 = arith.mulf %138, %118 : vector<8x4xf32>
      %140 = arith.addf %137, %139 : vector<8x4xf32>
      %141 = vector.broadcast %105 : vector<8x1xf32> to vector<8x4xf32>
      %142 = arith.mulf %141, %115 : vector<8x4xf32>
      %143 = vector.broadcast %109 : vector<8x1xf32> to vector<8x4xf32>
      %144 = arith.mulf %143, %116 : vector<8x4xf32>
      %145 = arith.addf %142, %144 : vector<8x4xf32>
      %146 = vector.broadcast %114 : vector<8x1xf32> to vector<8x4xf32>
      %147 = arith.mulf %146, %117 : vector<8x4xf32>
      %148 = arith.addf %145, %147 : vector<8x4xf32>
      %149 = vector.broadcast %51 : vector<8x1xf32> to vector<8x4xf32>
      %150 = arith.mulf %149, %118 : vector<8x4xf32>
      %151 = arith.addf %148, %150 : vector<8x4xf32>
      %152 = tpu.concatenate %129, %140, %151, %118, %46 in 1 : vector<8x4xf32>, vector<8x4xf32>, vector<8x4xf32>, vector<8x4xf32>, vector<8x8xf32> -> vector<8x24xf32>
      %153 = arith.index_cast %44 : i32 to index
      %c0_37 = arith.constant 0 : index
      %154 = vector.load %arg5[%153, %c0_37] : memref<16x24xf32, #tpu.memory_space<vmem>>, vector<8x24xf32>
      tpu.vector_store %arg5[%153, %c0_37], %152 {strides = array<i32>} : memref<16x24xf32, #tpu.memory_space<vmem>>, vector<8x24xf32>,
    }
    %c2_i32_26 = arith.constant 2 : i32
    return
  }
  func.func @transform_0(%arg0: i32) -> (i32, i32) {
    %c0_i32 = arith.constant 0 : i32
    %c0_i32_0 = arith.constant 0 : i32
    %c0_i32_1 = arith.constant 0 : i32
    return %c0_i32, %c0_i32_0 : i32, i32
  }
  func.func @transform_1(%arg0: i32) -> (i32, i32, i32) {
    %c0_i32 = arith.constant 0 : i32
    %c0_i32_0 = arith.constant 0 : i32
    %c0_i32_1 = arith.constant 0 : i32
    %c0_i32_2 = arith.constant 0 : i32
    return %c0_i32, %c0_i32_0, %c0_i32_1 : i32, i32, i32
  }
  func.func @transform_2(%arg0: i32) -> (i32, i32, i32) {
    %c0_i32 = arith.constant 0 : i32
    %c0_i32_0 = arith.constant 0 : i32
    %c0_i32_1 = arith.constant 0 : i32
    %c0_i32_2 = arith.constant 0 : i32
    return %c0_i32, %c0_i32_0, %c0_i32_1 : i32, i32, i32
  }
  func.func @transform_3(%arg0: i32) -> (i32, i32) {
    %c0_i32 = arith.constant 0 : i32
    %c0_i32_0 = arith.constant 0 : i32
    return %arg0, %c0_i32 : i32, i32
  }
  func.func @transform_4(%arg0: i32) -> (i32, i32) {
    %c0_i32 = arith.constant 0 : i32
    %c0_i32_0 = arith.constant 0 : i32
    return %arg0, %c0_i32 : i32, i32
  }
}

</mosaic_0001>

<llo_original>
// kernel: tpu_custom_call.1
$region0: #{tpu_custom_call.1}
  #allocation0 [shape = 'u32[]', space=smem, size = 0x4, offset = 0x4, fixed_abs, tag = 'smem constant byte address 0x4 - core index']
  #allocation1 [shape = 'u32[72,128]{1,0:T(1,128)}', space=vmem, size = 0x9000, scoped, tag = 'internal scratch']
  #allocation2 [shape = 'f32[16,8]{1,0:T(8,128)}', space=vmem, size = 0x2000, scoped, tag = 'scratch operand']
  %s0 = inlined_call_operand.hbm [shape: f32[2,64], index: 0, kind: input, shape index: {}]
  %s1 = inlined_call_operand.hbm [shape: f32[3,64,64], index: 1, kind: input, shape index: {}]
  %s2 = inlined_call_operand.hbm [shape: f32[3,1,64], index: 2, kind: input, shape index: {}]
  %s3 = inlined_call_operand.hbm [shape: f32[16,16], index: 3, kind: input, shape index: {}]
  %s4 = inlined_call_operand.hbm [shape: f32[16,24], index: 4, kind: output, shape index: {}]
  %s5 = sld [smem:[#allocation0]]
  $region49: #{tpu_custom_call.1} parent=0
    _
  %s7 = ssub.s32 1, %s5
  %s8 = scalar_select 0, %s7, %s5
  $region1: #{tpu_custom_call.1} parent=0
    #allocation3 [shape = 'u8[1024]{0}', space=vmem, size = 0x400, scoped, tag = 'input window, operand 0, single buffered']
    #allocation4 [shape = 's32[1]{0}', space=sflag, size = 0x4, scoped, tag = 'scoped memory for tpu_custom_call.1']
    #allocation5 [shape = 's32[1]{0}', space=sflag, size = 0x4, scoped, tag = 'scoped memory for tpu_custom_call.1']
    #allocation6 [shape = 'u8[98304]{0}', space=vmem, size = 0x18000, scoped, tag = 'input window, operand 1, single buffered']
    #allocation7 [shape = 's32[1]{0}', space=sflag, size = 0x4, scoped, tag = 'scoped memory for tpu_custom_call.1']
    #allocation8 [shape = 'u8[1536]{0}', space=vmem, size = 0x800, scoped, tag = 'input window, operand 2, single buffered']
    #allocation9 [shape = 'u8[8192]{0}', space=vmem, size = 0x2000, scoped, tag = 'input window, operand 3, single buffered']
    #allocation10 [shape = 's32[1]{0}', space=sflag, size = 0x4, scoped, tag = 'scoped memory for tpu_custom_call.1']
    #allocation11 [shape = 'u8[8192]{0}', space=vmem, size = 0x2000, scoped, tag = 'output window, operand 0, single buffered']
    %9 = vsyncpa [#allocation4], 0
    %10 = vsyncpa [#allocation7], 0
    %11 = vsyncpa [#allocation10], 0
    %12 = vsyncpa [#allocation5], 0
    // Predicated region
    $region2: #{tpu_custom_call.1} parent=1 // pred_check
      _
    $region3: #{tpu_custom_call.1} parent=1 // pred_check_branch
      %14 = sbr.rel (0) target = $region5
    $region4: #{tpu_custom_call.1} parent=1 // pred_region
      %16 = vsyncadd [#allocation4], 0
      %s18 = sshll.u32 %s0, 4
      %s19 = int_to_ptr.hbm [resolvable:$true] %s18
      %s20 = sshll.u32 [#allocation3], 4
      %s21 = int_to_ptr.vmem [resolvable:$true] %s20
      %23 = dma.hbm_to_vmem [thread:$0]  %s19, 32, %s21, [#allocation4]
    $region5: #{tpu_custom_call.1} parent=1 // pred_fallthru
      _
    // Predicated region
    $region6: #{tpu_custom_call.1} parent=1 // pred_check
      _
    $region7: #{tpu_custom_call.1} parent=1 // pred_check_branch
      %25 = sbr.rel (0) target = $region9
    $region8: #{tpu_custom_call.1} parent=1 // pred_region
      %27 = vsyncadd [#allocation7], 0
      %s28 = sshll.u32 %s1, 4
      %s29 = int_to_ptr.hbm [resolvable:$true] %s28
      %s30 = sshll.u32 [#allocation6], 4
      %s31 = int_to_ptr.vmem [resolvable:$true] %s30
      %36 = dma.hbm_to_vmem [thread:$0]  %s29, 3072, %s31, [#allocation7], 128, 128, 8
    $region9: #{tpu_custom_call.1} parent=1 // pred_fallthru
      _
    // Predicated region
    $region10: #{tpu_custom_call.1} parent=1 // pred_check
      _
    $region11: #{tpu_custom_call.1} parent=1 // pred_check_branch
      %38 = sbr.rel (0) target = $region13
    $region12: #{tpu_custom_call.1} parent=1 // pred_region
      %40 = vsyncadd [#allocation7], 0
      %s41 = sshll.u32 %s2, 4
      %s42 = int_to_ptr.hbm [resolvable:$true] %s41
      %s43 = sshll.u32 [#allocation8], 4
      %s44 = int_to_ptr.vmem [resolvable:$true] %s43
      %49 = dma.hbm_to_vmem [thread:$0]  %s42, 48, %s44, [#allocation7], 16, 16, 1
    $region13: #{tpu_custom_call.1} parent=1 // pred_fallthru
      _
    // Predicated region
    $region14: #{tpu_custom_call.1} parent=1 // pred_check
      _
    $region15: #{tpu_custom_call.1} parent=1 // pred_check_branch
      %51 = sbr.rel (0) target = $region17
    $region16: #{tpu_custom_call.1} parent=1 // pred_region
      %53 = vsyncadd [#allocation10], 0
      %s54 = sshll.u32 %s3, 4
      %s55 = int_to_ptr.hbm [resolvable:$true] %s54
      %s56 = sshll.u32 [#allocation9], 4
      %s57 = int_to_ptr.vmem [resolvable:$true] %s56
      %62 = dma.hbm_to_vmem [thread:$0]  %s55, 256, %s57, [#allocation10], 128, 128, 8
    $region17: #{tpu_custom_call.1} parent=1 // pred_fallthru
      _
    // Predicated region
    $region18: #{tpu_custom_call.1} parent=1 // pred_check
      _
    $region19: #{tpu_custom_call.1} parent=1 // pred_check_branch
      %64 = sbr.rel (0) target = $region21
    $region20: #{tpu_custom_call.1} parent=1 // pred_region
      %66 = dma.done [#allocation4], 32
    $region21: #{tpu_custom_call.1} parent=1 // pred_fallthru
      _
    // Predicated region
    $region22: #{tpu_custom_call.1} parent=1 // pred_check
      _
    $region23: #{tpu_custom_call.1} parent=1 // pred_check_branch
      %68 = sbr.rel (0) target = $region25
    $region24: #{tpu_custom_call.1} parent=1 // pred_region
      %70 = dma.done [#allocation7], 3072
    $region25: #{tpu_custom_call.1} parent=1 // pred_fallthru
      _
    // Predicated region
    $region26: #{tpu_custom_call.1} parent=1 // pred_check
      _
    $region27: #{tpu_custom_call.1} parent=1 // pred_check_branch
      %72 = sbr.rel (0) target = $region29
    $region28: #{tpu_custom_call.1} parent=1 // pred_region
      %74 = dma.done [#allocation7], 48
    $region29: #{tpu_custom_call.1} parent=1 // pred_fallthru
      _
    // Predicated region
    $region30: #{tpu_custom_call.1} parent=1 // pred_check
      _
    $region31: #{tpu_custom_call.1} parent=1 // pred_check_branch
      %76 = sbr.rel (0) target = $region33
    $region32: #{tpu_custom_call.1} parent=1 // pred_region
      %78 = dma.done [#allocation10], 256
    $region33: #{tpu_custom_call.1} parent=1 // pred_fallthru
      _
    %v79 = vld [vmem:[#allocation3] sm:$0x1]
    %v80 = vld [vmem:[#allocation3 + $0x1] sm:$0x1]
    %v81 = vlaneseq
    %v82 = vshrl.u32 %v81, 7
    %v83 = vadd.s32 %v82, 8
    %s84 = smul.u32 0, 16
    %v85 = vstv %s84
    %v86 = vadd.s32 %v85, %v82
    %v87 = vadd.s32 %v85, %v83
    %v88 = vcvt.s32.f32 %v86
    %v89 = vcvt.s32.f32 %v87
    %v90 = vrcp.pop 12.0
    %v91 = vmul.f32 12.0, %v90
    %v92 = vsub.f32 1.0, %v91
    %v93 = vmul.f32 %v90, %v92
    %v94 = vadd.f32 %v90, %v93
    %vm95 = vweird.f32 %v90
    %v96 = vsel %vm95, %v90, %v94
    %v97 = vmul.f32 %v88, %v96
    %v98 = vmul.f32 %v89, %v96
    %v99 = vperm.slane %v79, 0
    %v100 = vmul.f32 %v99, %v97
    %v101 = vmul.f32 %v99, %v98
    %v102 = vperm.slane %v80, 0
    %v103 = vadd.f32 %v100, %v102
    %v104 = vadd.f32 %v101, %v102
    %v105 = vand.u32 2147483647, %v103
    %vm106 = vcmp.le.f32.partialorder %v105, 0.7853982
    %vm107 = vcmp.lt.s32.totalorder %v103, 0
    %v108 = vand.u32 %v103, 2139095040
    %v109 = vshrl.u32 %v108, 23
    %v110 = vsub.s32 %v109, 127
    %v111 = vand.u32 2147483647, %v103
    %v112 = vand.u32 %v111, 8388607
    %v113 = vor.u32 %v112, 8388608
    %v114 = vsub.s32 0, %v113
    %v115 = vadd.s32 %v110, 1
    %vm116 = vcmp.gt.s32.totalorder %v115, 0
    %v117 = vsel %vm116, %v115, 0
    %v118 = vshrl.u32 %v117, 5
    %v119 = vand.u32 %v117, 31
    %v120 = vsub.s32 32, %v119
    %v121 = vshrl.u32 683565275, %v120
    %v122 = vshll.u32 683565275, %v119
    %v123 = vshrl.u32 2475754826, %v120
    %v124 = vor.u32 %v122, %v123
    %v125 = vshll.u32 2475754826, %v119
    %v126 = vshrl.u32 2131351028, %v120
    %v127 = vor.u32 %v125, %v126
    %v128 = vshll.u32 2131351028, %v119
    %v129 = vshrl.u32 2102212464, %v120
    %v130 = vor.u32 %v128, %v129
    %v131 = vshll.u32 2102212464, %v119
    %v132 = vshrl.u32 920167782, %v120
    %v133 = vor.u32 %v131, %v132
    %v134 = vshll.u32 920167782, %v119
    %v135 = vshrl.u32 1326507024, %v120
    %v136 = vor.u32 %v134, %v135
    %vm137 = vcmp.lt.s32.totalorder %v118, 1
    %vm138 = vcmp.lt.s32.totalorder %v118, 2
    %vm139 = vcmp.lt.s32.totalorder %v118, 3
    %vm140 = vcmp.lt.s32.totalorder %v118, 4
    %v141 = vsel %vm137, %v121, %v124
    %v142 = vsel %vm140, %v130, 2102212464
    %v143 = vsel %vm139, %v127, %v142
    %v144 = vsel %vm138, %v141, %v143
    %v145 = vsel %vm137, %v124, %v127
    %v146 = vsel %vm140, %v133, 920167782
    %v147 = vsel %vm139, %v130, %v146
    %v148 = vsel %vm138, %v145, %v147
    %v149 = vsel %vm137, %v127, %v130
    %v150 = vsel %vm140, %v136, 1326507024
    %v151 = vsel %vm139, %v133, %v150
    %v152 = vsel %vm138, %v149, %v151
    %v153 = vshll.u32 %v113, 8
    %v154 = vand.u32 %v153, 65535
    %v155 = vshrl.u32 %v153, 16
    %v156 = vand.u32 %v152, 65535
    %v157 = vshrl.u32 %v152, 16
    %v158 = vmul.u32 %v154, %v156
    %v159 = vmul.u32 %v154, %v157
    %v160 = vmul.u32 %v155, %v156
    %v161 = vmul.u32 %v155, %v157
    %v162 = vshll.u32 %v159, 16
    %v163 = vshrl.u32 %v159, 16
    %v164 = vshll.u32 %v160, 16
    %v165 = vshrl.u32 %v160, 16
    %vm166 = vc.u32 %v158, %v162
    %v167 = vsel %vm166, 1, 0
    %v168 = vadd.s32 %v158, %v162
    %v169 = vadd.s32 %v161, %v167
    %vm170 = vc.u32 %v168, %v164
    %v171 = vsel %vm170, 1, 0
    %v172 = vadd.s32 %v168, %v164
    %v173 = vadd.s32 %v169, %v171
    %v174 = vadd.s32 %v173, %v163
    %v175 = vadd.s32 %v174, %v165
    %v176 = vand.u32 %v153, 65535
    %v177 = vshrl.u32 %v153, 16
    %v178 = vand.u32 %v148, 65535
    %v179 = vshrl.u32 %v148, 16
    %v180 = vmul.u32 %v176, %v178
    %v181 = vmul.u32 %v176, %v179
    %v182 = vmul.u32 %v177, %v178
    %v183 = vmul.u32 %v177, %v179
    %v184 = vshll.u32 %v181, 16
    %v185 = vshrl.u32 %v181, 16
    %v186 = vshll.u32 %v182, 16
    %v187 = vshrl.u32 %v182, 16
    %vm188 = vc.u32 %v180, %v184
    %v189 = vsel %vm188, 1, 0
    %v190 = vadd.s32 %v180, %v184
    %v191 = vadd.s32 %v183, %v189
    %vm192 = vc.u32 %v190, %v186
    %v193 = vsel %vm192, 1, 0
    %v194 = vadd.s32 %v190, %v186
    %v195 = vadd.s32 %v191, %v193
    %v196 = vadd.s32 %v195, %v185
    %v197 = vadd.s32 %v196, %v187
    %v198 = vmul.u32 %v153, %v144
    %v199 = vadd.s32 %v175, %v194
    %vm200 = vc.u32 %v175, %v194
    %v201 = vadd.s32 %v197, 1
    %v202 = vsel %vm200, %v201, %v197
    %v203 = vadd.s32 %v198, %v202
    %v204 = vadd.s32 %v203, 536870912
    %v205 = vshrl.u32 %v204, 30
    %v206 = vshll.u32 %v205, 30
    %v207 = vsub.s32 %v203, %v206
    %vm208 = vcmp.lt.s32.totalorder %v207, 0
    %v209 = vsub.s32 0, %v207
    %v210 = vsel %vm208, %v209, %v207
    %v211 = vclz %v210
    %v212 = vsub.s32 %v211, 2
    %vm213 = vcmp.gt.s32.totalorder 0, %v212
    %v214 = vsel %vm213, 0, %v212
    %v215 = vsub.s32 32, %v214
    %v216 = vshll.u32 %v207, %v214
    %v217 = vshrl.u32 %v199, %v215
    %v218 = vor.u32 %v216, %v217
    %v219 = vsub.s32 4294967266, %v214
    %v220 = vadd.s32 %v219, 127
    %v221 = vshll.u32 %v220, 23
    %v222 = vor.u32 4788187, %v221
    %v223 = vand.u32 2147483647, %v222
    %v225 = vcvt.s32.f32 %v218
    %v226 = vmul.f32 %v225, %v223
    %v227 = vxor.u32 %v226, 2147483648
    %v228 = vsel %vm107, %v227, %v226
    %v229 = vsub.s32 4, %v205
    %v230 = vsel %vm107, %v229, %v205
    %v231 = vsel %vm106, %v103, %v228
    %v232 = vsel %vm106, 0, %v230
    %v233 = vmul.f32 %v231, %v231
    %v234 = vmul.f32 %v233, -0.001358992
    %v235 = vadd.f32 %v234, 0.041655596
    %v236 = vmul.f32 %v233, %v235
    %v237 = vadd.f32 %v236, -0.4999988
    %v238 = vmul.f32 %v233, %v237
    %v239 = vadd.f32 1.0, %v238
    %v240 = vmul.f32 %v231, %v231
    %v241 = vmul.f32 %v240, -0.00019511016
    %v242 = vadd.f32 %v241, 0.008332121
    %v243 = vmul.f32 %v240, %v242
    %v244 = vadd.f32 %v243, -0.16666654
    %v245 = vmul.f32 %v240, %v244
    %v246 = vadd.f32 %v245, 1.0
    %v247 = vmul.f32 %v246, %v231
    %vm248 = vweird.f32 %v103
    %v249 = vadd.s32 %v232, 3
    %v250 = vand.u32 %v249, 3
    %vm251 = vcmp.lt.s32.totalorder %v250, 2
    %vm252 = vcmp.eq.s32.totalorder %v250, 0
    %v253 = vxor.u32 %v247, 2147483648
    %v254 = vsel %vm252, %v239, %v253
    %vm255 = vcmp.eq.s32.totalorder %v250, 2
    %v256 = vxor.u32 %v239, 2147483648
    %v257 = vsel %vm255, %v256, %v247
    %v258 = vsel %vm251, %v254, %v257
    %v259 = vsel %vm248, nan, %v258
    %v260 = vand.u32 2147483647, %v104
    %vm261 = vcmp.le.f32.partialorder %v260, 0.7853982
    %vm262 = vcmp.lt.s32.totalorder %v104, 0
    %v263 = vand.u32 %v104, 2139095040
    %v264 = vshrl.u32 %v263, 23
    %v265 = vsub.s32 %v264, 127
    %v266 = vand.u32 2147483647, %v104
    %v267 = vand.u32 %v266, 8388607
    %v268 = vor.u32 %v267, 8388608
    %v269 = vsub.s32 0, %v268
    %v270 = vadd.s32 %v265, 1
    %vm271 = vcmp.gt.s32.totalorder %v270, 0
    %v272 = vsel %vm271, %v270, 0
    %v273 = vshrl.u32 %v272, 5
    %v274 = vand.u32 %v272, 31
    %v275 = vsub.s32 32, %v274
    %v276 = vshrl.u32 683565275, %v275
    %v277 = vshll.u32 683565275, %v274
    %v278 = vshrl.u32 2475754826, %v275
    %v279 = vor.u32 %v277, %v278
    %v280 = vshll.u32 2475754826, %v274
    %v281 = vshrl.u32 2131351028, %v275
    %v282 = vor.u32 %v280, %v281
    %v283 = vshll.u32 2131351028, %v274
    %v284 = vshrl.u32 2102212464, %v275
    %v285 = vor.u32 %v283, %v284
    %v286 = vshll.u32 2102212464, %v274
    %v287 = vshrl.u32 920167782, %v275
    %v288 = vor.u32 %v286, %v287
    %v289 = vshll.u32 920167782, %v274
    %v290 = vshrl.u32 1326507024, %v275
    %v291 = vor.u32 %v289, %v290
    %vm292 = vcmp.lt.s32.totalorder %v273, 1
    %vm293 = vcmp.lt.s32.totalorder %v273, 2
    %vm294 = vcmp.lt.s32.totalorder %v273, 3
    %vm295 = vcmp.lt.s32.totalorder %v273, 4
    %v296 = vsel %vm292, %v276, %v279
    %v297 = vsel %vm295, %v285, 2102212464
    %v298 = vsel %vm294, %v282, %v297
    %v299 = vsel %vm293, %v296, %v298
    %v300 = vsel %vm292, %v279, %v282
    %v301 = vsel %vm295, %v288, 920167782
    %v302 = vsel %vm294, %v285, %v301
    %v303 = vsel %vm293, %v300, %v302
    %v304 = vsel %vm292, %v282, %v285
    %v305 = vsel %vm295, %v291, 1326507024
    %v306 = vsel %vm294, %v288, %v305
    %v307 = vsel %vm293, %v304, %v306
    %v308 = vshll.u32 %v268, 8
    %v309 = vand.u32 %v308, 65535
    %v310 = vshrl.u32 %v308, 16
    %v311 = vand.u32 %v307, 65535
    %v312 = vshrl.u32 %v307, 16
    %v313 = vmul.u32 %v309, %v311
    %v314 = vmul.u32 %v309, %v312
    %v315 = vmul.u32 %v310, %v311
    %v316 = vmul.u32 %v310, %v312
    %v317 = vshll.u32 %v314, 16
    %v318 = vshrl.u32 %v314, 16
    %v319 = vshll.u32 %v315, 16
    %v320 = vshrl.u32 %v315, 16
    %vm321 = vc.u32 %v313, %v317
    %v322 = vsel %vm321, 1, 0
    %v323 = vadd.s32 %v313, %v317
    %v324 = vadd.s32 %v316, %v322
    %vm325 = vc.u32 %v323, %v319
    %v326 = vsel %vm325, 1, 0
    %v327 = vadd.s32 %v323, %v319
    %v328 = vadd.s32 %v324, %v326
    %v329 = vadd.s32 %v328, %v318
    %v330 = vadd.s32 %v329, %v320
    %v331 = vand.u32 %v308, 65535
    %v332 = vshrl.u32 %v308, 16
    %v333 = vand.u32 %v303, 65535
    %v334 = vshrl.u32 %v303, 16
    %v335 = vmul.u32 %v331, %v333
    %v336 = vmul.u32 %v331, %v334
    %v337 = vmul.u32 %v332, %v333
    %v338 = vmul.u32 %v332, %v334
    %v339 = vshll.u32 %v336, 16
    %v340 = vshrl.u32 %v336, 16
    %v341 = vshll.u32 %v337, 16
    %v342 = vshrl.u32 %v337, 16
    %vm343 = vc.u32 %v335, %v339
    %v344 = vsel %vm343, 1, 0
    %v345 = vadd.s32 %v335, %v339
    %v346 = vadd.s32 %v338, %v344
    %vm347 = vc.u32 %v345, %v341
    %v348 = vsel %vm347, 1, 0
    %v349 = vadd.s32 %v345, %v341
    %v350 = vadd.s32 %v346, %v348
    %v351 = vadd.s32 %v350, %v340
    %v352 = vadd.s32 %v351, %v342
    %v353 = vmul.u32 %v308, %v299
    %v354 = vadd.s32 %v330, %v349
    %vm355 = vc.u32 %v330, %v349
    %v356 = vadd.s32 %v352, 1
    %v357 = vsel %vm355, %v356, %v352
    %v358 = vadd.s32 %v353, %v357
    %v359 = vadd.s32 %v358, 536870912
    %v360 = vshrl.u32 %v359, 30
    %v361 = vshll.u32 %v360, 30
    %v362 = vsub.s32 %v358, %v361
    %vm363 = vcmp.lt.s32.totalorder %v362, 0
    %v364 = vsub.s32 0, %v362
    %v365 = vsel %vm363, %v364, %v362
    %v366 = vclz %v365
    %v367 = vsub.s32 %v366, 2
    %vm368 = vcmp.gt.s32.totalorder 0, %v367
    %v369 = vsel %vm368, 0, %v367
    %v370 = vsub.s32 32, %v369
    %v371 = vshll.u32 %v362, %v369
    %v372 = vshrl.u32 %v354, %v370
    %v373 = vor.u32 %v371, %v372
    %v374 = vsub.s32 4294967266, %v369
    %v375 = vadd.s32 %v374, 127
    %v376 = vshll.u32 %v375, 23
    %v377 = vor.u32 4788187, %v376
    %v378 = vand.u32 2147483647, %v377
    %v380 = vcvt.s32.f32 %v373
    %v381 = vmul.f32 %v380, %v378
    %v382 = vxor.u32 %v381, 2147483648
    %v383 = vsel %vm262, %v382, %v381
    %v384 = vsub.s32 4, %v360
    %v385 = vsel %vm262, %v384, %v360
    %v386 = vsel %vm261, %v104, %v383
    %v387 = vsel %vm261, 0, %v385
    %v388 = vmul.f32 %v386, %v386
    %v389 = vmul.f32 %v388, -0.001358992
    %v390 = vadd.f32 %v389, 0.041655596
    %v391 = vmul.f32 %v388, %v390
    %v392 = vadd.f32 %v391, -0.4999988
    %v393 = vmul.f32 %v388, %v392
    %v394 = vadd.f32 1.0, %v393
    %v395 = vmul.f32 %v386, %v386
    %v396 = vmul.f32 %v395, -0.00019511016
    %v397 = vadd.f32 %v396, 0.008332121
    %v398 = vmul.f32 %v395, %v397
    %v399 = vadd.f32 %v398, -0.16666654
    %v400 = vmul.f32 %v395, %v399
    %v401 = vadd.f32 %v400, 1.0
    %v402 = vmul.f32 %v401, %v386
    %vm403 = vweird.f32 %v104
    %v404 = vadd.s32 %v387, 3
    %v405 = vand.u32 %v404, 3
    %vm406 = vcmp.lt.s32.totalorder %v405, 2
    %vm407 = vcmp.eq.s32.totalorder %v405, 0
    %v408 = vxor.u32 %v402, 2147483648
    %v409 = vsel %vm407, %v394, %v408
    %vm410 = vcmp.eq.s32.totalorder %v405, 2
    %v411 = vxor.u32 %v394, 2147483648
    %v412 = vsel %vm410, %v411, %v402
    %v413 = vsel %vm406, %v409, %v412
    %v414 = vsel %vm403, nan, %v413
    %v415 = vld [vmem:[#allocation6] sm:$0xff]
    %v416 = vld [vmem:[#allocation6 + $0x8] sm:$0xff]
    %v417 = vld [vmem:[#allocation6 + $0x10] sm:$0xff]
    %v418 = vld [vmem:[#allocation6 + $0x18] sm:$0xff]
    %v419 = vld [vmem:[#allocation6 + $0x20] sm:$0xff]
    %v420 = vld [vmem:[#allocation6 + $0x28] sm:$0xff]
    %v421 = vld [vmem:[#allocation6 + $0x30] sm:$0xff]
    %v422 = vld [vmem:[#allocation6 + $0x38] sm:$0xff]
    %v423 = vld [vmem:[#allocation8] sm:$0x1]
    %v425 = vperm.slane %v423, 0
    %vm427 = vcmask 523264
    %v429 = vsel %vm427, %v259, 0
    %v432 = vsel %vm427, %v414, 0
    %434 = vmatpush.msra.mxu0 0.0
    %435 = vmatpush.msra.mxu0 0.0
    %436 = vmatpush.msra.mxu0 0.0
    %437 = vmatpush.msra.mxu0 0.0
    %438 = vmatpush.msra.mxu0 0.0
    %439 = vmatpush.msra.mxu0 0.0
    %440 = vmatpush.msra.mxu0 0.0
    %441 = vmatpush.msra.mxu0 0.0
    %442 = vmatpush.msra.mxu0 %v422
    %443 = vmatpush.msra.mxu0 %v421
    %444 = vmatpush.msra.mxu0 %v420
    %445 = vmatpush.msra.mxu0 %v419
    %446 = vmatpush.msra.mxu0 %v418
    %447 = vmatpush.msra.mxu0 %v417
    %448 = vmatpush.msra.mxu0 %v416
    %449 = vmatpush.msra.mxu0 %v415
    %450 = vmatmul.f32.gmra.mxu0 %v429
    %v451 = vpop.f32.mrf.mxu0
    %v452 = vadd.f32 %v425, %v451
    %453 = vmatmul.f32.gmra.mxu0 %v432
    %v454 = vpop.f32.mrf.mxu0
    %v455 = vadd.f32 %v425, %v454
    %456 = vdwg.mxu0
    %v457 = vmax.f32 %v452, 0.0
    %v458 = vmax.f32 %v455, 0.0
    %s459 = scalar_lea.vmem [#allocation6], 64
    %v460 = vld [vmem:[%s459] sm:$0xff]
    %v461 = vld [vmem:[%s459 + $0x8] sm:$0xff]
    %v462 = vld [vmem:[%s459 + $0x10] sm:$0xff]
    %v463 = vld [vmem:[%s459 + $0x18] sm:$0xff]
    %v464 = vld [vmem:[%s459 + $0x20] sm:$0xff]
    %v465 = vld [vmem:[%s459 + $0x28] sm:$0xff]
    %v466 = vld [vmem:[%s459 + $0x30] sm:$0xff]
    %v467 = vld [vmem:[%s459 + $0x38] sm:$0xff]
    %s468 = scalar_lea.vmem [#allocation8], 1
    %v469 = vld [vmem:[%s468] sm:$0x1]
    %v471 = vperm.slane %v469, 0
    %v474 = vsel %vm427, %v457, 0
    %v477 = vsel %vm427, %v458, 0
    %479 = vmatpush.msra.mxu0 0.0
    %480 = vmatpush.msra.mxu0 0.0
    %481 = vmatpush.msra.mxu0 0.0
    %482 = vmatpush.msra.mxu0 0.0
    %483 = vmatpush.msra.mxu0 0.0
    %484 = vmatpush.msra.mxu0 0.0
    %485 = vmatpush.msra.mxu0 0.0
    %486 = vmatpush.msra.mxu0 0.0
    %487 = vmatpush.msra.mxu0 %v467
    %488 = vmatpush.msra.mxu0 %v466
    %489 = vmatpush.msra.mxu0 %v465
    %490 = vmatpush.msra.mxu0 %v464
    %491 = vmatpush.msra.mxu0 %v463
    %492 = vmatpush.msra.mxu0 %v462
    %493 = vmatpush.msra.mxu0 %v461
    %494 = vmatpush.msra.mxu0 %v460
    %495 = vmatmul.f32.gmra.mxu0 %v474
    %v496 = vpop.f32.mrf.mxu0
    %v497 = vadd.f32 %v471, %v496
    %498 = vmatmul.f32.gmra.mxu0 %v477
    %v499 = vpop.f32.mrf.mxu0
    %v500 = vadd.f32 %v471, %v499
    %501 = vdwg.mxu0
    %v502 = vmax.f32 %v497, 0.0
    %v503 = vmax.f32 %v500, 0.0
    %s504 = scalar_lea.vmem [#allocation6], 128
    %v505 = vld [vmem:[%s504] sm:$0xff]
    %v506 = vld [vmem:[%s504 + $0x8] sm:$0xff]
    %v507 = vld [vmem:[%s504 + $0x10] sm:$0xff]
    %v508 = vld [vmem:[%s504 + $0x18] sm:$0xff]
    %v509 = vld [vmem:[%s504 + $0x20] sm:$0xff]
    %v510 = vld [vmem:[%s504 + $0x28] sm:$0xff]
    %v511 = vld [vmem:[%s504 + $0x30] sm:$0xff]
    %v512 = vld [vmem:[%s504 + $0x38] sm:$0xff]
    %s513 = scalar_lea.vmem [#allocation8], 2
    %v514 = vld [vmem:[%s513] sm:$0x1]
    %v516 = vperm.slane %v514, 0
    %v519 = vsel %vm427, %v502, 0
    %v522 = vsel %vm427, %v503, 0
    %524 = vmatpush.msra.mxu0 0.0
    %525 = vmatpush.msra.mxu0 0.0
    %526 = vmatpush.msra.mxu0 0.0
    %527 = vmatpush.msra.mxu0 0.0
    %528 = vmatpush.msra.mxu0 0.0
    %529 = vmatpush.msra.mxu0 0.0
    %530 = vmatpush.msra.mxu0 0.0
    %531 = vmatpush.msra.mxu0 0.0
    %532 = vmatpush.msra.mxu0 %v512
    %533 = vmatpush.msra.mxu0 %v511
    %534 = vmatpush.msra.mxu0 %v510
    %535 = vmatpush.msra.mxu0 %v509
    %536 = vmatpush.msra.mxu0 %v508
    %537 = vmatpush.msra.mxu0 %v507
    %538 = vmatpush.msra.mxu0 %v506
    %539 = vmatpush.msra.mxu0 %v505
    %540 = vmatmul.f32.gmra.mxu0 %v519
    %v541 = vpop.f32.mrf.mxu0
    %v542 = vadd.f32 %v516, %v541
    %543 = vmatmul.f32.gmra.mxu0 %v522
    %v544 = vpop.f32.mrf.mxu0
    %v545 = vadd.f32 %v516, %v544
    %546 = vdwg.mxu0
    %vm547 = vcmask 64512
    %548 = vst.msk [vmem:[#allocation2] sm:$0xff] %vm547, %v542
    %549 = vst.msk [vmem:[#allocation2 + $0x8] sm:$0xff] %vm547, %v545
    loop: start=0, step=1, limit=2
    $region34: #{tpu_custom_call.1} parent=1 // loop_pre_header
      _
    $region35: #{tpu_custom_call.1} parent=1 // loop_header
      %s551 = sphi 0, %s555
      %p552 = scmp.ge.s32.totalorder %s551, 2
    $region36: #{tpu_custom_call.1} parent=1 // loop_header_branch
      %554 = sbr.rel (%p552) target = $region40
    $region37: #{tpu_custom_call.1} parent=1 // loop_body
      %s556 = smul.u32 %s551, 8
      %s557 = scalar_lea.vmem [#allocation2], %s556
      %v558 = vld [vmem:[%s557] sm:$0xff]
      %s559 = scalar_lea.vmem [#allocation9], %s556
      %v560 = vld [vmem:[%s559] sm:$0xff]
      %v561 = vmul.f32 %v558, %v558
      %563 = vrot.lane.b32.xlu0 %v561, 127
      %v564 = vpop.permute.xlu0 %563
      %v566 = vadd.f32 %v561, %v564
      %567 = vrot.lane.b32.xlu0 %v561, 126
      %v568 = vpop.permute.xlu0 %567
      %v570 = vadd.f32 %v566, %v568
      %v571 = vrsqrt.pop %v570
      %v572 = vmul.f32 %v571, %v570
      %v573 = vmul.f32 %v572, %v571
      %v574 = vmul.f32 0.5, %v573
      %v575 = vsub.f32 1.5, %v574
      %v576 = vmul.f32 %v571, %v575
      %v577 = vmul.f32 %v570, %v576
      %vm578 = vcmp.eq.f32.partialorder %v570, inf
      %v579 = vsel %vm578, %v570, %v577
      %vm580 = vcmp.eq.f32.partialorder %v570, 0.0
      %v581 = vand.u32 %v570, 2147483648
      %v582 = vsel %vm580, %v581, %v579
      %v583 = vadd.f32 %v582, 1e-15
      %v584 = vand.u32 2147483647, %v583
      %vm585 = vcmp.le.f32.partialorder %v584, 0.7853982
      %vm586 = vcmp.lt.s32.totalorder %v583, 0
      %v587 = vand.u32 %v583, 2139095040
      %v588 = vshrl.u32 %v587, 23
      %v589 = vsub.s32 %v588, 127
      %v590 = vand.u32 2147483647, %v583
      %v591 = vand.u32 %v590, 8388607
      %v592 = vor.u32 %v591, 8388608
      %v593 = vsub.s32 0, %v592
      %v594 = vadd.s32 %v589, 1
      %vm595 = vcmp.gt.s32.totalorder %v594, 0
      %v596 = vsel %vm595, %v594, 0
      %v597 = vshrl.u32 %v596, 5
      %v598 = vand.u32 %v596, 31
      %v599 = vsub.s32 32, %v598
      %v600 = vshrl.u32 683565275, %v599
      %v601 = vshll.u32 683565275, %v598
      %v602 = vshrl.u32 2475754826, %v599
      %v603 = vor.u32 %v601, %v602
      %v604 = vshll.u32 2475754826, %v598
      %v605 = vshrl.u32 2131351028, %v599
      %v606 = vor.u32 %v604, %v605
      %v607 = vshll.u32 2131351028, %v598
      %v608 = vshrl.u32 2102212464, %v599
      %v609 = vor.u32 %v607, %v608
      %v610 = vshll.u32 2102212464, %v598
      %v611 = vshrl.u32 920167782, %v599
      %v612 = vor.u32 %v610, %v611
      %v613 = vshll.u32 920167782, %v598
      %v614 = vshrl.u32 1326507024, %v599
      %v615 = vor.u32 %v613, %v614
      %vm616 = vcmp.lt.s32.totalorder %v597, 1
      %vm617 = vcmp.lt.s32.totalorder %v597, 2
      %vm618 = vcmp.lt.s32.totalorder %v597, 3
      %vm619 = vcmp.lt.s32.totalorder %v597, 4
      %v620 = vsel %vm616, %v600, %v603
      %v621 = vsel %vm619, %v609, 2102212464
      %v622 = vsel %vm618, %v606, %v621
      %v623 = vsel %vm617, %v620, %v622
      %v624 = vsel %vm616, %v603, %v606
      %v625 = vsel %vm619, %v612, 920167782
      %v626 = vsel %vm618, %v609, %v625
      %v627 = vsel %vm617, %v624, %v626
      %v628 = vsel %vm616, %v606, %v609
      %v629 = vsel %vm619, %v615, 1326507024
      %v630 = vsel %vm618, %v612, %v629
      %v631 = vsel %vm617, %v628, %v630
      %v632 = vshll.u32 %v592, 8
      %v633 = vand.u32 %v632, 65535
      %v634 = vshrl.u32 %v632, 16
      %v635 = vand.u32 %v631, 65535
      %v636 = vshrl.u32 %v631, 16
      %v637 = vmul.u32 %v633, %v635
      %v638 = vmul.u32 %v633, %v636
      %v639 = vmul.u32 %v634, %v635
      %v640 = vmul.u32 %v634, %v636
      %v641 = vshll.u32 %v638, 16
      %v642 = vshrl.u32 %v638, 16
      %v643 = vshll.u32 %v639, 16
      %v644 = vshrl.u32 %v639, 16
      %vm645 = vc.u32 %v637, %v641
      %v646 = vsel %vm645, 1, 0
      %v647 = vadd.s32 %v637, %v641
      %v648 = vadd.s32 %v640, %v646
      %vm649 = vc.u32 %v647, %v643
      %v650 = vsel %vm649, 1, 0
      %v651 = vadd.s32 %v647, %v643
      %v652 = vadd.s32 %v648, %v650
      %v653 = vadd.s32 %v652, %v642
      %v654 = vadd.s32 %v653, %v644
      %v655 = vand.u32 %v632, 65535
      %v656 = vshrl.u32 %v632, 16
      %v657 = vand.u32 %v627, 65535
      %v658 = vshrl.u32 %v627, 16
      %v659 = vmul.u32 %v655, %v657
      %v660 = vmul.u32 %v655, %v658
      %v661 = vmul.u32 %v656, %v657
      %v662 = vmul.u32 %v656, %v658
      %v663 = vshll.u32 %v660, 16
      %v664 = vshrl.u32 %v660, 16
      %v665 = vshll.u32 %v661, 16
      %v666 = vshrl.u32 %v661, 16
      %vm667 = vc.u32 %v659, %v663
      %v668 = vsel %vm667, 1, 0
      %v669 = vadd.s32 %v659, %v663
      %v670 = vadd.s32 %v662, %v668
      %vm671 = vc.u32 %v669, %v665
      %v672 = vsel %vm671, 1, 0
      %v673 = vadd.s32 %v669, %v665
      %v674 = vadd.s32 %v670, %v672
      %v675 = vadd.s32 %v674, %v664
      %v676 = vadd.s32 %v675, %v666
      %v677 = vmul.u32 %v632, %v623
      %v678 = vadd.s32 %v654, %v673
      %vm679 = vc.u32 %v654, %v673
      %v680 = vadd.s32 %v676, 1
      %v681 = vsel %vm679, %v680, %v676
      %v682 = vadd.s32 %v677, %v681
      %v683 = vadd.s32 %v682, 536870912
      %v684 = vshrl.u32 %v683, 30
      %v685 = vshll.u32 %v684, 30
      %v686 = vsub.s32 %v682, %v685
      %vm687 = vcmp.lt.s32.totalorder %v686, 0
      %v688 = vsub.s32 0, %v686
      %v689 = vsel %vm687, %v688, %v686
      %v690 = vclz %v689
      %v691 = vsub.s32 %v690, 2
      %vm692 = vcmp.gt.s32.totalorder 0, %v691
      %v693 = vsel %vm692, 0, %v691
      %v694 = vsub.s32 32, %v693
      %v695 = vshll.u32 %v686, %v693
      %v696 = vshrl.u32 %v678, %v694
      %v697 = vor.u32 %v695, %v696
      %v698 = vsub.s32 4294967266, %v693
      %v699 = vadd.s32 %v698, 127
      %v700 = vshll.u32 %v699, 23
      %v701 = vor.u32 4788187, %v700
      %v702 = vand.u32 2147483647, %v701
      %v704 = vcvt.s32.f32 %v697
      %v705 = vmul.f32 %v704, %v702
      %v706 = vxor.u32 %v705, 2147483648
      %v707 = vsel %vm586, %v706, %v705
      %v708 = vsub.s32 4, %v684
      %v709 = vsel %vm586, %v708, %v684
      %v710 = vsel %vm585, %v583, %v707
      %v711 = vsel %vm585, 0, %v709
      %v712 = vmul.f32 %v710, %v710
      %v713 = vmul.f32 %v712, -0.001358992
      %v714 = vadd.f32 %v713, 0.041655596
      %v715 = vmul.f32 %v712, %v714
      %v716 = vadd.f32 %v715, -0.4999988
      %v717 = vmul.f32 %v712, %v716
      %v718 = vadd.f32 1.0, %v717
      %v719 = vmul.f32 %v710, %v710
      %v720 = vmul.f32 %v719, -0.00019511016
      %v721 = vadd.f32 %v720, 0.008332121
      %v722 = vmul.f32 %v719, %v721
      %v723 = vadd.f32 %v722, -0.16666654
      %v724 = vmul.f32 %v719, %v723
      %v725 = vadd.f32 %v724, 1.0
      %v726 = vmul.f32 %v725, %v710
      %vm727 = vweird.f32 %v583
      %v728 = vadd.s32 %v711, 3
      %v729 = vand.u32 %v728, 3
      %vm730 = vcmp.lt.s32.totalorder %v729, 2
      %vm731 = vcmp.eq.s32.totalorder %v729, 0
      %v732 = vxor.u32 %v726, 2147483648
      %v733 = vsel %vm731, %v718, %v732
      %vm734 = vcmp.eq.s32.totalorder %v729, 2
      %v735 = vxor.u32 %v718, 2147483648
      %v736 = vsel %vm734, %v735, %v726
      %v737 = vsel %vm730, %v733, %v736
      %v738 = vsel %vm727, nan, %v737
      %v739 = vrcp.pop %v583
      %v740 = vmul.f32 %v583, %v739
      %v741 = vsub.f32 1.0, %v740
      %v742 = vmul.f32 %v739, %v741
      %v743 = vadd.f32 %v739, %v742
      %vm744 = vweird.f32 %v583
      %vm745 = vweird.f32 %v739
      %vm746 = vmor %vm744, %vm745
      %v747 = vsel %vm746, %v739, %v743
      %v748 = vand.u32 2147483647, %v583
      %vm749 = vcmp.eq.f32.partialorder %v748, 8.507059e+37
      %v750 = vand.u32 %v583, 2147483648
      %v751 = vor.u32 1.1754944e-38, %v750
      %v752 = vsel %vm749, %v751, %v747
      %v753 = vmul.f32 %v738, %v752
      %v754 = vand.u32 2147483647, %v583
      %vm755 = vcmp.le.f32.partialorder %v754, 0.7853982
      %vm756 = vcmp.lt.s32.totalorder %v583, 0
      %v757 = vand.u32 %v583, 2139095040
      %v758 = vshrl.u32 %v757, 23
      %v759 = vsub.s32 %v758, 127
      %v760 = vand.u32 2147483647, %v583
      %v761 = vand.u32 %v760, 8388607
      %v762 = vor.u32 %v761, 8388608
      %v763 = vsub.s32 0, %v762
      %v764 = vadd.s32 %v759, 1
      %vm765 = vcmp.gt.s32.totalorder %v764, 0
      %v766 = vsel %vm765, %v764, 0
      %v767 = vshrl.u32 %v766, 5
      %v768 = vand.u32 %v766, 31
      %v769 = vsub.s32 32, %v768
      %v770 = vshrl.u32 683565275, %v769
      %v771 = vshll.u32 683565275, %v768
      %v772 = vshrl.u32 2475754826, %v769
      %v773 = vor.u32 %v771, %v772
      %v774 = vshll.u32 2475754826, %v768
      %v775 = vshrl.u32 2131351028, %v769
      %v776 = vor.u32 %v774, %v775
      %v777 = vshll.u32 2131351028, %v768
      %v778 = vshrl.u32 2102212464, %v769
      %v779 = vor.u32 %v777, %v778
      %v780 = vshll.u32 2102212464, %v768
      %v781 = vshrl.u32 920167782, %v769
      %v782 = vor.u32 %v780, %v781
      %v783 = vshll.u32 920167782, %v768
      %v784 = vshrl.u32 1326507024, %v769
      %v785 = vor.u32 %v783, %v784
      %vm786 = vcmp.lt.s32.totalorder %v767, 1
      %vm787 = vcmp.lt.s32.totalorder %v767, 2
      %vm788 = vcmp.lt.s32.totalorder %v767, 3
      %vm789 = vcmp.lt.s32.totalorder %v767, 4
      %v790 = vsel %vm786, %v770, %v773
      %v791 = vsel %vm789, %v779, 2102212464
      %v792 = vsel %vm788, %v776, %v791
      %v793 = vsel %vm787, %v790, %v792
      %v794 = vsel %vm786, %v773, %v776
      %v795 = vsel %vm789, %v782, 920167782
      %v796 = vsel %vm788, %v779, %v795
      %v797 = vsel %vm787, %v794, %v796
      %v798 = vsel %vm786, %v776, %v779
      %v799 = vsel %vm789, %v785, 1326507024
      %v800 = vsel %vm788, %v782, %v799
      %v801 = vsel %vm787, %v798, %v800
      %v802 = vshll.u32 %v762, 8
      %v803 = vand.u32 %v802, 65535
      %v804 = vshrl.u32 %v802, 16
      %v805 = vand.u32 %v801, 65535
      %v806 = vshrl.u32 %v801, 16
      %v807 = vmul.u32 %v803, %v805
      %v808 = vmul.u32 %v803, %v806
      %v809 = vmul.u32 %v804, %v805
      %v810 = vmul.u32 %v804, %v806
      %v811 = vshll.u32 %v808, 16
      %v812 = vshrl.u32 %v808, 16
      %v813 = vshll.u32 %v809, 16
      %v814 = vshrl.u32 %v809, 16
      %vm815 = vc.u32 %v807, %v811
      %v816 = vsel %vm815, 1, 0
      %v817 = vadd.s32 %v807, %v811
      %v818 = vadd.s32 %v810, %v816
      %vm819 = vc.u32 %v817, %v813
      %v820 = vsel %vm819, 1, 0
      %v821 = vadd.s32 %v817, %v813
      %v822 = vadd.s32 %v818, %v820
      %v823 = vadd.s32 %v822, %v812
      %v824 = vadd.s32 %v823, %v814
      %v825 = vand.u32 %v802, 65535
      %v826 = vshrl.u32 %v802, 16
      %v827 = vand.u32 %v797, 65535
      %v828 = vshrl.u32 %v797, 16
      %v829 = vmul.u32 %v825, %v827
      %v830 = vmul.u32 %v825, %v828
      %v831 = vmul.u32 %v826, %v827
      %v832 = vmul.u32 %v826, %v828
      %v833 = vshll.u32 %v830, 16
      %v834 = vshrl.u32 %v830, 16
      %v835 = vshll.u32 %v831, 16
      %v836 = vshrl.u32 %v831, 16
      %vm837 = vc.u32 %v829, %v833
      %v838 = vsel %vm837, 1, 0
      %v839 = vadd.s32 %v829, %v833
      %v840 = vadd.s32 %v832, %v838
      %vm841 = vc.u32 %v839, %v835
      %v842 = vsel %vm841, 1, 0
      %v843 = vadd.s32 %v839, %v835
      %v844 = vadd.s32 %v840, %v842
      %v845 = vadd.s32 %v844, %v834
      %v846 = vadd.s32 %v845, %v836
      %v847 = vmul.u32 %v802, %v793
      %v848 = vadd.s32 %v824, %v843
      %vm849 = vc.u32 %v824, %v843
      %v850 = vadd.s32 %v846, 1
      %v851 = vsel %vm849, %v850, %v846
      %v852 = vadd.s32 %v847, %v851
      %v853 = vadd.s32 %v852, 536870912
      %v854 = vshrl.u32 %v853, 30
      %v855 = vshll.u32 %v854, 30
      %v856 = vsub.s32 %v852, %v855
      %vm857 = vcmp.lt.s32.totalorder %v856, 0
      %v858 = vsub.s32 0, %v856
      %v859 = vsel %vm857, %v858, %v856
      %v860 = vclz %v859
      %v861 = vsub.s32 %v860, 2
      %vm862 = vcmp.gt.s32.totalorder 0, %v861
      %v863 = vsel %vm862, 0, %v861
      %v864 = vsub.s32 32, %v863
      %v865 = vshll.u32 %v856, %v863
      %v866 = vshrl.u32 %v848, %v864
      %v867 = vor.u32 %v865, %v866
      %v868 = vsub.s32 4294967266, %v863
      %v869 = vadd.s32 %v868, 127
      %v870 = vshll.u32 %v869, 23
      %v871 = vor.u32 4788187, %v870
      %v872 = vand.u32 2147483647, %v871
      %v874 = vcvt.s32.f32 %v867
      %v875 = vmul.f32 %v874, %v872
      %v876 = vxor.u32 %v875, 2147483648
      %v877 = vsel %vm756, %v876, %v875
      %v878 = vsub.s32 4, %v854
      %v879 = vsel %vm756, %v878, %v854
      %v880 = vsel %vm755, %v583, %v877
      %v881 = vsel %vm755, 0, %v879
      %v882 = vmul.f32 %v880, %v880
      %v883 = vmul.f32 %v882, -0.001358992
      %v884 = vadd.f32 %v883, 0.041655596
      %v885 = vmul.f32 %v882, %v884
      %v886 = vadd.f32 %v885, -0.4999988
      %v887 = vmul.f32 %v882, %v886
      %v888 = vadd.f32 1.0, %v887
      %v889 = vmul.f32 %v880, %v880
      %v890 = vmul.f32 %v889, -0.00019511016
      %v891 = vadd.f32 %v890, 0.008332121
      %v892 = vmul.f32 %v889, %v891
      %v893 = vadd.f32 %v892, -0.16666654
      %v894 = vmul.f32 %v889, %v893
      %v895 = vadd.f32 %v894, 1.0
      %v896 = vmul.f32 %v895, %v880
      %vm897 = vweird.f32 %v583
      %v898 = vand.u32 %v881, 3
      %vm899 = vcmp.lt.s32.totalorder %v898, 2
      %vm900 = vcmp.eq.s32.totalorder %v898, 0
      %v901 = vxor.u32 %v896, 2147483648
      %v902 = vsel %vm900, %v888, %v901
      %vm903 = vcmp.eq.s32.totalorder %v898, 2
      %v904 = vxor.u32 %v888, 2147483648
      %v905 = vsel %vm903, %v904, %v896
      %v906 = vsel %vm899, %v902, %v905
      %v907 = vsel %vm897, nan, %v906
      %v908 = vsub.f32 1.0, %v907
      %v909 = vmul.f32 %v583, %v583
      %v910 = vrcp.pop %v909
      %v911 = vmul.f32 %v909, %v910
      %v912 = vsub.f32 1.0, %v911
      %v913 = vmul.f32 %v910, %v912
      %v914 = vadd.f32 %v910, %v913
      %vm915 = vweird.f32 %v909
      %vm916 = vweird.f32 %v910
      %vm917 = vmor %vm915, %vm916
      %v918 = vsel %vm917, %v910, %v914
      %v919 = vand.u32 2147483647, %v909
      %vm920 = vcmp.eq.f32.partialorder %v919, 8.507059e+37
      %v921 = vand.u32 %v909, 2147483648
      %v922 = vor.u32 1.1754944e-38, %v921
      %v923 = vsel %vm920, %v922, %v918
      %v924 = vmul.f32 %v908, %v923
      %v925 = vsub.f32 %v561, %v570
      %v926 = vmul.f32 %v924, %v925
      %v927 = vadd.f32 %v926, 1.0
      %v928 = vsub.f32 0.0, %v558
      %930 = vrot.lane.b32.xlu0 %v928, 126
      %v931 = vpop.permute.xlu0 %930
      %v933 = vmul.f32 %v753, %v931
      %935 = vrot.lane.b32.xlu0 %v558, 127
      %v936 = vpop.permute.xlu0 %935
      %v938 = vmul.f32 %v558, %v936
      %v939 = vmul.f32 %v924, %v938
      %v940 = vadd.f32 %v933, %v939
      %v941 = vmul.f32 %v753, %v936
      %942 = vrot.lane.b32.xlu0 %v558, 126
      %v943 = vpop.permute.xlu0 %942
      %v945 = vmul.f32 %v558, %v943
      %v946 = vmul.f32 %v924, %v945
      %v947 = vadd.f32 %v941, %v946
      %v948 = vmul.f32 %v753, %v943
      %v949 = vadd.f32 %v948, %v939
      %951 = vrot.lane.b32.xlu0 %v570, 1
      %v952 = vpop.permute.xlu0 %951
      %v954 = vsub.f32 %v561, %v952
      %956 = vrot.lane.b32.xlu0 %v954, 127
      %v957 = vpop.permute.xlu0 %956
      %v959 = vmul.f32 %v924, %v957
      %v960 = vadd.f32 %v959, 1.0
      %v961 = vmul.f32 %v753, %v928
      %963 = vrot.lane.b32.xlu0 %v938, 127
      %v964 = vpop.permute.xlu0 %963
      %v966 = vmul.f32 %v924, %v964
      %v967 = vadd.f32 %v961, %v966
      %968 = vrot.lane.b32.xlu0 %v928, 127
      %v969 = vpop.permute.xlu0 %968
      %v971 = vmul.f32 %v753, %v969
      %v972 = vadd.f32 %v971, %v946
      %v973 = vmul.f32 %v753, %v558
      %v974 = vadd.f32 %v973, %v966
      %975 = vrot.lane.b32.xlu0 %v570, 2
      %v976 = vpop.permute.xlu0 %975
      %v978 = vsub.f32 %v561, %v976
      %980 = vrot.lane.b32.xlu0 %v978, 126
      %v981 = vpop.permute.xlu0 %980
      %v983 = vmul.f32 %v924, %v981
      %v984 = vadd.f32 %v983, 1.0
      %986 = vset.pattern.permute.xlu0 3
      %987 = vperm.xlu0 %986, %v927
      %v988 = vpop.permute.xlu0 %987
      %v990 = vmul.f32 %v988, %v560
      %992 = vset.pattern.permute.xlu0 3
      %993 = vperm.xlu0 %992, %v940
      %v994 = vpop.permute.xlu0 %993
      %v996 = vmul.f32 %v994, %v560
      %998 = vrot.lane.b32.xlu0 %v996, 124
      %v999 = vpop.permute.xlu0 %998
      %v1001 = vadd.f32 %v990, %v999
      %1003 = vset.pattern.permute.xlu0 3
      %1004 = vperm.xlu0 %1003, %v947
      %v1005 = vpop.permute.xlu0 %1004
      %v1007 = vmul.f32 %v1005, %v560
      %1009 = vrot.lane.b32.xlu0 %v1007, 120
      %v1010 = vpop.permute.xlu0 %1009
      %v1012 = vadd.f32 %v1001, %v1010
      %1013 = vset.pattern.permute.xlu0 0
      %1014 = vperm.xlu0 %1013, %v558
      %v1015 = vpop.permute.xlu0 %1014
      %v1017 = vmul.f32 %v1015, %v560
      %1019 = vrot.lane.b32.xlu0 %v1017, 116
      %v1020 = vpop.permute.xlu0 %1019
      %v1022 = vadd.f32 %v1012, %v1020
      %1024 = vset.pattern.permute.xlu0 3
      %1025 = vperm.xlu0 %1024, %v949
      %v1026 = vpop.permute.xlu0 %1025
      %v1028 = vmul.f32 %v1026, %v560
      %1030 = vset.pattern.permute.xlu0 3
      %1031 = vperm.xlu0 %1030, %v960
      %v1032 = vpop.permute.xlu0 %1031
      %v1034 = vmul.f32 %v1032, %v560
      %1036 = vrot.lane.b32.xlu0 %v1034, 124
      %v1037 = vpop.permute.xlu0 %1036
      %v1039 = vadd.f32 %v1028, %v1037
      %1041 = vset.pattern.permute.xlu0 3
      %1042 = vperm.xlu0 %1041, %v967
      %v1043 = vpop.permute.xlu0 %1042
      %v1045 = vmul.f32 %v1043, %v560
      %1047 = vrot.lane.b32.xlu0 %v1045, 120
      %v1048 = vpop.permute.xlu0 %1047
      %v1050 = vadd.f32 %v1039, %v1048
      %1051 = vset.pattern.permute.xlu0 1
      %1052 = vperm.xlu0 %1051, %v558
      %v1053 = vpop.permute.xlu0 %1052
      %v1055 = vmul.f32 %v1053, %v560
      %1057 = vrot.lane.b32.xlu0 %v1055, 116
      %v1058 = vpop.permute.xlu0 %1057
      %v1060 = vadd.f32 %v1050, %v1058
      %1062 = vset.pattern.permute.xlu0 3
      %1063 = vperm.xlu0 %1062, %v972
      %v1064 = vpop.permute.xlu0 %1063
      %v1066 = vmul.f32 %v1064, %v560
      %1068 = vset.pattern.permute.xlu0 3
      %1069 = vperm.xlu0 %1068, %v974
      %v1070 = vpop.permute.xlu0 %1069
      %v1072 = vmul.f32 %v1070, %v560
      %1074 = vrot.lane.b32.xlu0 %v1072, 124
      %v1075 = vpop.permute.xlu0 %1074
      %v1077 = vadd.f32 %v1066, %v1075
      %1079 = vset.pattern.permute.xlu0 3
      %1080 = vperm.xlu0 %1079, %v984
      %v1081 = vpop.permute.xlu0 %1080
      %v1083 = vmul.f32 %v1081, %v560
      %1085 = vrot.lane.b32.xlu0 %v1083, 120
      %v1086 = vpop.permute.xlu0 %1085
      %v1088 = vadd.f32 %v1077, %v1086
      %1089 = vset.pattern.permute.xlu0 2
      %1090 = vperm.xlu0 %1089, %v558
      %v1091 = vpop.permute.xlu0 %1090
      %v1093 = vmul.f32 %v1091, %v560
      %1095 = vrot.lane.b32.xlu0 %v1093, 116
      %v1096 = vpop.permute.xlu0 %1095
      %v1098 = vadd.f32 %v1088, %v1096
      %1100 = vrot.lane.b32.xlu0 %v1060, 4
      %v1101 = vpop.permute.xlu0 %1100
      %1104 = vrot.lane.b32.xlu0 %v1098, 8
      %v1105 = vpop.permute.xlu0 %1104
      %1107 = vrot.lane.b32.xlu0 %v558, 16
      %v1108 = vpop.permute.xlu0 %1107
      %vm1110 = vcmask 31744
      %v1111 = vsel %vm1110, %v1022, %v1101
      %v1112 = vsel %vm547, %v1111, %v1105
      %vm1113 = vcmask 97280
      %v1114 = vsel %vm1113, %v1112, %v560
      %vm1115 = vcmask 130048
      %v1116 = vsel %vm1115, %v1114, %v1108
      %s1117 = scalar_lea.vmem [#allocation11], %s556
      %vm1118 = vcmask 195584
      %1119 = vst.msk [vmem:[%s1117] sm:$0xff] %vm1118, %v1116
    $region38: #{tpu_custom_call.1} parent=1 // loop_footer
      %s555 = sadd.s32 1, %s551
    $region39: #{tpu_custom_call.1} parent=1 // loop_footer_branch
      %550 = sbr.rel target = $region35
    $region40: #{tpu_custom_call.1} parent=1 // loop_exit
      _
    // Predicated region
    $region41: #{tpu_custom_call.1} parent=1 // pred_check
      _
    $region42: #{tpu_custom_call.1} parent=1 // pred_check_branch
      %1121 = sbr.rel (0) target = $region44
    $region43: #{tpu_custom_call.1} parent=1 // pred_region
      %1123 = vsyncadd [#allocation5], 0
      %s1124 = sshll.u32 [#allocation11], 4
      %s1125 = int_to_ptr.vmem [resolvable:$true] %s1124
      %s1126 = sshll.u32 %s4, 4
      %s1127 = int_to_ptr.hbm [resolvable:$true] %s1126
      %1132 = dma.vmem_to_hbm [thread:$0]  %s1125, 256, %s1127, [#allocation5], 128, 128, 8
    $region44: #{tpu_custom_call.1} parent=1 // pred_fallthru
      _
    // Predicated region
    $region45: #{tpu_custom_call.1} parent=1 // pred_check
      _
    $region46: #{tpu_custom_call.1} parent=1 // pred_check_branch
      %1134 = sbr.rel (0) target = $region48
    $region47: #{tpu_custom_call.1} parent=1 // pred_region
      %1136 = dma.done [#allocation5], 256
    $region48: #{tpu_custom_call.1} parent=1 // pred_fallthru
      _
    %1137 = vsyncpa [#allocation4], 1
    %1138 = vsyncpa [#allocation7], 1
    %1139 = vsyncpa [#allocation10], 1
    %1140 = vsyncpa [#allocation5], 1

</llo_original>
